<compile_context>
chip_gen: v6e
topology: v6e:2x2x1
jax: 0.10.0
libtpu: 0.0.40
codegen_flags: <defaults>
</compile_context>

<pallas_src>
import numpy as np
import jax
import jax.numpy as jnp
from jax.experimental import pallas as pl
from jax.experimental.pallas import tpu as pltpu


# ---------------- deterministic filter weights (same as the PyTorch __init__) ----
def get_gaussian_kernel(k=3, mu=0, sigma=1, normalize=True):
    g1 = np.linspace(-1, 1, k)
    x, y = np.meshgrid(g1, g1)
    d = (x ** 2 + y ** 2) ** 0.5
    g2 = np.exp(-(d - mu) ** 2 / (2 * sigma ** 2))
    g2 = g2 / (2 * np.pi * sigma ** 2)
    if normalize:
        g2 = g2 / np.sum(g2)
    return g2


def get_sobel_kernel(k=3):
    r = np.linspace(-(k // 2), k // 2, k)
    x, y = np.meshgrid(r, r)
    num = x
    den = x ** 2 + y ** 2
    den[:, k // 2] = 1
    return num / den


K = 3
PAD = K // 2
GAUSS = get_gaussian_kernel(K).astype(np.float32)
SOBEL_X = get_sobel_kernel(K).astype(np.float32)
SOBEL_Y = SOBEL_X.T.copy()

# Separable factorizations (exact for the module defaults mu=0, sigma=1):
#   GAUSS   = outer(gv, gv)                 (gv symmetric)
#   SOBEL_X = outer([.5, 1, .5], [-1, 0, 1])
#   SOBEL_Y = outer([-1, 0, 1], [.5, 1, .5])
GV = GAUSS[PAD, :].astype(np.float64) / np.sqrt(float(GAUSS[PAD, PAD]))
S_SM = np.array([0.5, 1.0, 0.5])
S_DF = np.array([-1.0, 0.0, 1.0])
assert np.allclose(np.outer(GV, GV), GAUSS, rtol=1e-5, atol=1e-6)
assert np.allclose(np.outer(S_SM, S_DF), SOBEL_X, rtol=1e-5, atol=1e-6)
assert np.allclose(np.outer(S_DF, S_SM), SOBEL_Y, rtol=1e-5, atol=1e-6)
G0 = float(GV[0])   # == GV[2]
G1 = float(GV[1])


# ---------------- Pallas kernel --------------------------------------------------
def canny_forward(img):
    """img: (B, C, H, W) float32 -> (blurred, grad_x, grad_y, grad_magnitude)."""
    img = img.astype(jnp.float32)
    B, C, H, W = img.shape
    Hp, Wp = H + 2 * PAD, W + 2 * PAD

    def kernel(img_ref, blur_ref, gx_ref, gy_ref, gm_ref, pad_ref):
        # Zero the halo scratch every grid step (scratch persists across steps
        # and is per-core under megacore, so this cannot be gated on step 0);
        # only the interior is overwritten below, the 1-pixel border stays 0.
        pad_ref[...] = jnp.zeros_like(pad_ref)

        bsum = jnp.zeros((H, W), jnp.float32)
        # C is small and static -> unrolled; blur accumulates in vregs.
        for c in range(C):
            pad_ref[pl.ds(PAD, H), pl.ds(PAD, W)] = img_ref[0, c]
            ip = pad_ref[...]                                            # (Hp, Wp)
            # separable gaussian: row pass along W (lanes) ...
            hg = (G1 * ip[:, PAD:PAD + W]
                  + G0 * (ip[:, 0:W] + ip[:, 2 * PAD:2 * PAD + W]))      # (Hp, W)
            # ... then column pass along H (sublanes)
            bl = (G1 * hg[PAD:PAD + H, :]
                  + G0 * (hg[0:H, :] + hg[2 * PAD:2 * PAD + H, :]))      # (H, W)
            blur_ref[0, c] = bl
            bsum = bsum + bl

        # Sobel of the channel-summed blur (== sum_c sobel(blur_c) by linearity),
        # reusing the same halo scratch.
        pad_ref[pl.ds(PAD, H), pl.ds(PAD, W)] = bsum
        bp = pad_ref[...]                                                # (Hp, Wp)
        left = bp[:, 0:W]
        mid = bp[:, PAD:PAD + W]
        right = bp[:, 2 * PAD:2 * PAD + W]
        d_row = right - left                   # [-1, 0, 1] row pass
        s_row = mid + 0.5 * (left + right)     # [.5, 1, .5] row pass
        gx = d_row[PAD:PAD + H, :] + 0.5 * (d_row[0:H, :] + d_row[2 * PAD:2 * PAD + H, :])
        gy = s_row[2 * PAD:2 * PAD + H, :] - s_row[0:H, :]

        gx_ref[0, 0] = gx
        gy_ref[0, 0] = gy
        gm_ref[0, 0] = gx * gx + gy * gy

    out_shapes = (
        jax.ShapeDtypeStruct((B, C, H, W), jnp.float32),  # blurred
        jax.ShapeDtypeStruct((B, 1, H, W), jnp.float32),  # grad_x
        jax.ShapeDtypeStruct((B, 1, H, W), jnp.float32),  # grad_y
        jax.ShapeDtypeStruct((B, 1, H, W), jnp.float32),  # grad_magnitude
    )

    # VMEM budget: double-buffered (input + blurred) blocks, three (H, W) output
    # planes (double-buffered), plus the small halo scratch.  Clamped so every
    # TPU generation (v5e scoped default 16 MiB .. v7x 64 MiB physical) accepts it.
    block_bytes = 4 * H * W * (2 * C + 3) * 2 + 4 * Hp * Wp
    vmem_limit = int(min(64 * 1024 * 1024,
                         max(16 * 1024 * 1024, block_bytes + (8 << 20))))

    return pl.pallas_call(
        kernel,
        out_shape=out_shapes,
        grid_spec=pltpu.PrefetchScalarGridSpec(
            num_scalar_prefetch=0,
            grid=(B,),
            in_specs=[pl.BlockSpec((1, C, H, W), lambda b: (b, 0, 0, 0))],
            out_specs=[
                pl.BlockSpec((1, C, H, W), lambda b: (b, 0, 0, 0)),  # blurred
                pl.BlockSpec((1, 1, H, W), lambda b: (b, 0, 0, 0)),  # grad_x
                pl.BlockSpec((1, 1, H, W), lambda b: (b, 0, 0, 0)),  # grad_y
                pl.BlockSpec((1, 1, H, W), lambda b: (b, 0, 0, 0)),  # grad_magnitude
            ],
            scratch_shapes=[pltpu.VMEM((Hp, Wp), jnp.float32)],
        ),
        compiler_params=pltpu.CompilerParams(
            dimension_semantics=("parallel",),
            vmem_limit_bytes=vmem_limit),
    )(img)


# ---------------- pure-JAX reference (mirrors the PyTorch forward exactly) -------
def ref_forward(img):
    B, C, H, W = img.shape

    def conv2d(x, w):  # cross-correlation with zero padding 1 (nn.Conv2d semantics)
        xp = jnp.pad(x, ((0, 0), (PAD, PAD), (PAD, PAD)))
        out = jnp.zeros((B, H, W), jnp.float32)
        for i in range(K):
            for j in range(K):
                out = out + float(w[i, j]) * xp[:, i:i + H, j:j + W]
        return out

    blurred = jnp.stack([conv2d(img[:, c], GAUSS) for c in range(C)], axis=1)
    gx = jnp.zeros((B, H, W), jnp.float32)
    gy = jnp.zeros((B, H, W), jnp.float32)
    for c in range(C):
        gx = gx + conv2d(blurred[:, c], SOBEL_X)
        gy = gy + conv2d(blurred[:, c], SOBEL_Y)
    gx = gx[:, None]
    gy = gy[:, None]
    return blurred, gx, gy, gx ** 2 + gy ** 2


if __name__ == "__main__":
    key = jax.random.PRNGKey(0)
    B, C, H, W = 2, 4, 16, 16
    img = jax.random.normal(key, (B, C, H, W), dtype=jnp.float32)

    outs = jax.block_until_ready(canny_forward(img))
    refs = ref_forward(img)

    for name, o, r in zip(("blurred", "grad_x", "grad_y", "grad_magnitude"), outs, refs):
        np.testing.assert_allclose(np.asarray(o), np.asarray(r),
                                   rtol=1e-4, atol=1e-4, err_msg=name)

    print("KERNEL_OK")
</pallas_src>

<mosaic_0001>
module attributes {stable_mosaic.version = 11 : i64} {
  func.func @kernel(%arg0: i32, %arg1: memref<1x4x16x16xf32, #tpu.memory_space<vmem>>, %arg2: memref<1x4x16x16xf32, #tpu.memory_space<vmem>>, %arg3: memref<1x1x16x16xf32, #tpu.memory_space<vmem>>, %arg4: memref<1x1x16x16xf32, #tpu.memory_space<vmem>>, %arg5: memref<1x1x16x16xf32, #tpu.memory_space<vmem>>, %arg6: memref<18x18xf32, #tpu.memory_space<vmem>>) attributes {dimension_semantics = [#tpu.dimension_semantics<parallel>], iteration_bounds = array<i64: 2>, scalar_prefetch = 0 : i64, scratch_operands = 1 : i64, tpu.core_type = #tpu.core_type<tc>, window_params = [{transform_indices = @transform_0, window_bounds = array<i64: 1, 4, 16, 16>}, {transform_indices = @transform_1, window_bounds = array<i64: 1, 4, 16, 16>}, {transform_indices = @transform_2, window_bounds = array<i64: 1, 1, 16, 16>}, {transform_indices = @transform_3, window_bounds = array<i64: 1, 1, 16, 16>}, {transform_indices = @transform_4, window_bounds = array<i64: 1, 1, 16, 16>}]} {
    %cst = arith.constant 0.000000e+00 : f32
    %0 = vector.broadcast %cst : f32 to vector<18x18xf32>
    %c0 = arith.constant 0 : index
    %c0_0 = arith.constant 0 : index
    %1 = vector.load %arg6[%c0, %c0_0] : memref<18x18xf32, #tpu.memory_space<vmem>>, vector<18x18xf32>
    tpu.vector_store %arg6[%c0, %c0_0], %0 {strides = array<i32>} : memref<18x18xf32, #tpu.memory_space<vmem>>, vector<18x18xf32>,
    %cst_1 = arith.constant 0.000000e+00 : f32
    %2 = vector.broadcast %cst_1 : f32 to vector<16x16xf32>
    %c0_2 = arith.constant 0 : index
    %c0_3 = arith.constant 0 : index
    %c0_4 = arith.constant 0 : index
    %c0_5 = arith.constant 0 : index
    %3 = vector.load %arg1[%c0_2, %c0_3, %c0_4, %c0_5] : memref<1x4x16x16xf32, #tpu.memory_space<vmem>>, vector<1x1x16x16xf32>
    %4 = vector.shape_cast %3 : vector<1x1x16x16xf32> to vector<16x16xf32>
    %c1 = arith.constant 1 : index
    %c1_6 = arith.constant 1 : index
    %5 = vector.load %arg6[%c1, %c1_6] : memref<18x18xf32, #tpu.memory_space<vmem>>, vector<16x16xf32>
    tpu.vector_store %arg6[%c1, %c1_6], %4 {strides = array<i32>} : memref<18x18xf32, #tpu.memory_space<vmem>>, vector<16x16xf32>,
    %c0_7 = arith.constant 0 : index
    %c0_8 = arith.constant 0 : index
    %6 = vector.load %arg6[%c0_7, %c0_8] : memref<18x18xf32, #tpu.memory_space<vmem>>, vector<18x18xf32>
    %7 = vector.extract_strided_slice %6 {offsets = [0, 1], sizes = [18, 16], strides = [1, 1]} : vector<18x18xf32> to vector<18x16xf32>
    %cst_9 = arith.constant 0.451862752 : f32
    %8 = vector.broadcast %cst_9 : f32 to vector<18x16xf32>
    %9 = arith.mulf %8, %7 : vector<18x16xf32>
    %10 = vector.extract_strided_slice %6 {offsets = [0, 0], sizes = [18, 16], strides = [1, 1]} : vector<18x18xf32> to vector<18x16xf32>
    %11 = vector.extract_strided_slice %6 {offsets = [0, 2], sizes = [18, 16], strides = [1, 1]} : vector<18x18xf32> to vector<18x16xf32>
    %12 = arith.addf %10, %11 : vector<18x16xf32>
    %cst_10 = arith.constant 0.274068624 : f32
    %13 = vector.broadcast %cst_10 : f32 to vector<18x16xf32>
    %14 = arith.mulf %13, %12 : vector<18x16xf32>
    %15 = arith.addf %9, %14 : vector<18x16xf32>
    %16 = vector.extract_strided_slice %15 {offsets = [1, 0], sizes = [16, 16], strides = [1, 1]} : vector<18x16xf32> to vector<16x16xf32>
    %cst_11 = arith.constant 0.451862752 : f32
    %17 = vector.broadcast %cst_11 : f32 to vector<16x16xf32>
    %18 = arith.mulf %17, %16 : vector<16x16xf32>
    %19 = vector.extract_strided_slice %15 {offsets = [0, 0], sizes = [16, 16], strides = [1, 1]} : vector<18x16xf32> to vector<16x16xf32>
    %20 = vector.extract_strided_slice %15 {offsets = [2, 0], sizes = [16, 16], strides = [1, 1]} : vector<18x16xf32> to vector<16x16xf32>
    %21 = arith.addf %19, %20 : vector<16x16xf32>
    %cst_12 = arith.constant 0.274068624 : f32
    %22 = vector.broadcast %cst_12 : f32 to vector<16x16xf32>
    %23 = arith.mulf %22, %21 : vector<16x16xf32>
    %24 = arith.addf %18, %23 : vector<16x16xf32>
    %c0_13 = arith.constant 0 : index
    %c0_14 = arith.constant 0 : index
    %c0_15 = arith.constant 0 : index
    %c0_16 = arith.constant 0 : index
    %25 = vector.load %arg2[%c0_13, %c0_14, %c0_15, %c0_16] : memref<1x4x16x16xf32, #tpu.memory_space<vmem>>, vector<1x1x16x16xf32>
    %26 = vector.shape_cast %25 : vector<1x1x16x16xf32> to vector<16x16xf32>
    %27 = vector.shape_cast %24 : vector<16x16xf32> to vector<1x1x16x16xf32>
    tpu.vector_store %arg2[%c0_13, %c0_14, %c0_15, %c0_16], %27 {strides = array<i32>} : memref<1x4x16x16xf32, #tpu.memory_space<vmem>>, vector<1x1x16x16xf32>,
    %28 = arith.addf %2, %24 : vector<16x16xf32>
    %c0_17 = arith.constant 0 : index
    %c1_18 = arith.constant 1 : index
    %c0_19 = arith.constant 0 : index
    %c0_20 = arith.constant 0 : index
    %29 = vector.load %arg1[%c0_17, %c1_18, %c0_19, %c0_20] : memref<1x4x16x16xf32, #tpu.memory_space<vmem>>, vector<1x1x16x16xf32>
    %30 = vector.shape_cast %29 : vector<1x1x16x16xf32> to vector<16x16xf32>
    %c1_21 = arith.constant 1 : index
    %c1_22 = arith.constant 1 : index
    %31 = vector.load %arg6[%c1_21, %c1_22] : memref<18x18xf32, #tpu.memory_space<vmem>>, vector<16x16xf32>
    tpu.vector_store %arg6[%c1_21, %c1_22], %30 {strides = array<i32>} : memref<18x18xf32, #tpu.memory_space<vmem>>, vector<16x16xf32>,
    %c0_23 = arith.constant 0 : index
    %c0_24 = arith.constant 0 : index
    %32 = vector.load %arg6[%c0_23, %c0_24] : memref<18x18xf32, #tpu.memory_space<vmem>>, vector<18x18xf32>
    %33 = vector.extract_strided_slice %32 {offsets = [0, 1], sizes = [18, 16], strides = [1, 1]} : vector<18x18xf32> to vector<18x16xf32>
    %cst_25 = arith.constant 0.451862752 : f32
    %34 = vector.broadcast %cst_25 : f32 to vector<18x16xf32>
    %35 = arith.mulf %34, %33 : vector<18x16xf32>
    %36 = vector.extract_strided_slice %32 {offsets = [0, 0], sizes = [18, 16], strides = [1, 1]} : vector<18x18xf32> to vector<18x16xf32>
    %37 = vector.extract_strided_slice %32 {offsets = [0, 2], sizes = [18, 16], strides = [1, 1]} : vector<18x18xf32> to vector<18x16xf32>
    %38 = arith.addf %36, %37 : vector<18x16xf32>
    %cst_26 = arith.constant 0.274068624 : f32
    %39 = vector.broadcast %cst_26 : f32 to vector<18x16xf32>
    %40 = arith.mulf %39, %38 : vector<18x16xf32>
    %41 = arith.addf %35, %40 : vector<18x16xf32>
    %42 = vector.extract_strided_slice %41 {offsets = [1, 0], sizes = [16, 16], strides = [1, 1]} : vector<18x16xf32> to vector<16x16xf32>
    %cst_27 = arith.constant 0.451862752 : f32
    %43 = vector.broadcast %cst_27 : f32 to vector<16x16xf32>
    %44 = arith.mulf %43, %42 : vector<16x16xf32>
    %45 = vector.extract_strided_slice %41 {offsets = [0, 0], sizes = [16, 16], strides = [1, 1]} : vector<18x16xf32> to vector<16x16xf32>
    %46 = vector.extract_strided_slice %41 {offsets = [2, 0], sizes = [16, 16], strides = [1, 1]} : vector<18x16xf32> to vector<16x16xf32>
    %47 = arith.addf %45, %46 : vector<16x16xf32>
    %cst_28 = arith.constant 0.274068624 : f32
    %48 = vector.broadcast %cst_28 : f32 to vector<16x16xf32>
    %49 = arith.mulf %48, %47 : vector<16x16xf32>
    %50 = arith.addf %44, %49 : vector<16x16xf32>
    %c0_29 = arith.constant 0 : index
    %c1_30 = arith.constant 1 : index
    %c0_31 = arith.constant 0 : index
    %c0_32 = arith.constant 0 : index
    %51 = vector.load %arg2[%c0_29, %c1_30, %c0_31, %c0_32] : memref<1x4x16x16xf32, #tpu.memory_space<vmem>>, vector<1x1x16x16xf32>
    %52 = vector.shape_cast %51 : vector<1x1x16x16xf32> to vector<16x16xf32>
    %53 = vector.shape_cast %50 : vector<16x16xf32> to vector<1x1x16x16xf32>
    tpu.vector_store %arg2[%c0_29, %c1_30, %c0_31, %c0_32], %53 {strides = array<i32>} : memref<1x4x16x16xf32, #tpu.memory_space<vmem>>, vector<1x1x16x16xf32>,
    %54 = arith.addf %28, %50 : vector<16x16xf32>
    %c0_33 = arith.constant 0 : index
    %c2 = arith.constant 2 : index
    %c0_34 = arith.constant 0 : index
    %c0_35 = arith.constant 0 : index
    %55 = vector.load %arg1[%c0_33, %c2, %c0_34, %c0_35] : memref<1x4x16x16xf32, #tpu.memory_space<vmem>>, vector<1x1x16x16xf32>
    %56 = vector.shape_cast %55 : vector<1x1x16x16xf32> to vector<16x16xf32>
    %c1_36 = arith.constant 1 : index
    %c1_37 = arith.constant 1 : index
    %57 = vector.load %arg6[%c1_36, %c1_37] : memref<18x18xf32, #tpu.memory_space<vmem>>, vector<16x16xf32>
    tpu.vector_store %arg6[%c1_36, %c1_37], %56 {strides = array<i32>} : memref<18x18xf32, #tpu.memory_space<vmem>>, vector<16x16xf32>,
    %c0_38 = arith.constant 0 : index
    %c0_39 = arith.constant 0 : index
    %58 = vector.load %arg6[%c0_38, %c0_39] : memref<18x18xf32, #tpu.memory_space<vmem>>, vector<18x18xf32>
    %59 = vector.extract_strided_slice %58 {offsets = [0, 1], sizes = [18, 16], strides = [1, 1]} : vector<18x18xf32> to vector<18x16xf32>
    %cst_40 = arith.constant 0.451862752 : f32
    %60 = vector.broadcast %cst_40 : f32 to vector<18x16xf32>
    %61 = arith.mulf %60, %59 : vector<18x16xf32>
    %62 = vector.extract_strided_slice %58 {offsets = [0, 0], sizes = [18, 16], strides = [1, 1]} : vector<18x18xf32> to vector<18x16xf32>
    %63 = vector.extract_strided_slice %58 {offsets = [0, 2], sizes = [18, 16], strides = [1, 1]} : vector<18x18xf32> to vector<18x16xf32>
    %64 = arith.addf %62, %63 : vector<18x16xf32>
    %cst_41 = arith.constant 0.274068624 : f32
    %65 = vector.broadcast %cst_41 : f32 to vector<18x16xf32>
    %66 = arith.mulf %65, %64 : vector<18x16xf32>
    %67 = arith.addf %61, %66 : vector<18x16xf32>
    %68 = vector.extract_strided_slice %67 {offsets = [1, 0], sizes = [16, 16], strides = [1, 1]} : vector<18x16xf32> to vector<16x16xf32>
    %cst_42 = arith.constant 0.451862752 : f32
    %69 = vector.broadcast %cst_42 : f32 to vector<16x16xf32>
    %70 = arith.mulf %69, %68 : vector<16x16xf32>
    %71 = vector.extract_strided_slice %67 {offsets = [0, 0], sizes = [16, 16], strides = [1, 1]} : vector<18x16xf32> to vector<16x16xf32>
    %72 = vector.extract_strided_slice %67 {offsets = [2, 0], sizes = [16, 16], strides = [1, 1]} : vector<18x16xf32> to vector<16x16xf32>
    %73 = arith.addf %71, %72 : vector<16x16xf32>
    %cst_43 = arith.constant 0.274068624 : f32
    %74 = vector.broadcast %cst_43 : f32 to vector<16x16xf32>
    %75 = arith.mulf %74, %73 : vector<16x16xf32>
    %76 = arith.addf %70, %75 : vector<16x16xf32>
    %c0_44 = arith.constant 0 : index
    %c2_45 = arith.constant 2 : index
    %c0_46 = arith.constant 0 : index
    %c0_47 = arith.constant 0 : index
    %77 = vector.load %arg2[%c0_44, %c2_45, %c0_46, %c0_47] : memref<1x4x16x16xf32, #tpu.memory_space<vmem>>, vector<1x1x16x16xf32>
    %78 = vector.shape_cast %77 : vector<1x1x16x16xf32> to vector<16x16xf32>
    %79 = vector.shape_cast %76 : vector<16x16xf32> to vector<1x1x16x16xf32>
    tpu.vector_store %arg2[%c0_44, %c2_45, %c0_46, %c0_47], %79 {strides = array<i32>} : memref<1x4x16x16xf32, #tpu.memory_space<vmem>>, vector<1x1x16x16xf32>,
    %80 = arith.addf %54, %76 : vector<16x16xf32>
    %c0_48 = arith.constant 0 : index
    %c3 = arith.constant 3 : index
    %c0_49 = arith.constant 0 : index
    %c0_50 = arith.constant 0 : index
    %81 = vector.load %arg1[%c0_48, %c3, %c0_49, %c0_50] : memref<1x4x16x16xf32, #tpu.memory_space<vmem>>, vector<1x1x16x16xf32>
    %82 = vector.shape_cast %81 : vector<1x1x16x16xf32> to vector<16x16xf32>
    %c1_51 = arith.constant 1 : index
    %c1_52 = arith.constant 1 : index
    %83 = vector.load %arg6[%c1_51, %c1_52] : memref<18x18xf32, #tpu.memory_space<vmem>>, vector<16x16xf32>
    tpu.vector_store %arg6[%c1_51, %c1_52], %82 {strides = array<i32>} : memref<18x18xf32, #tpu.memory_space<vmem>>, vector<16x16xf32>,
    %c0_53 = arith.constant 0 : index
    %c0_54 = arith.constant 0 : index
    %84 = vector.load %arg6[%c0_53, %c0_54] : memref<18x18xf32, #tpu.memory_space<vmem>>, vector<18x18xf32>
    %85 = vector.extract_strided_slice %84 {offsets = [0, 1], sizes = [18, 16], strides = [1, 1]} : vector<18x18xf32> to vector<18x16xf32>
    %cst_55 = arith.constant 0.451862752 : f32
    %86 = vector.broadcast %cst_55 : f32 to vector<18x16xf32>
    %87 = arith.mulf %86, %85 : vector<18x16xf32>
    %88 = vector.extract_strided_slice %84 {offsets = [0, 0], sizes = [18, 16], strides = [1, 1]} : vector<18x18xf32> to vector<18x16xf32>
    %89 = vector.extract_strided_slice %84 {offsets = [0, 2], sizes = [18, 16], strides = [1, 1]} : vector<18x18xf32> to vector<18x16xf32>
    %90 = arith.addf %88, %89 : vector<18x16xf32>
    %cst_56 = arith.constant 0.274068624 : f32
    %91 = vector.broadcast %cst_56 : f32 to vector<18x16xf32>
    %92 = arith.mulf %91, %90 : vector<18x16xf32>
    %93 = arith.addf %87, %92 : vector<18x16xf32>
    %94 = vector.extract_strided_slice %93 {offsets = [1, 0], sizes = [16, 16], strides = [1, 1]} : vector<18x16xf32> to vector<16x16xf32>
    %cst_57 = arith.constant 0.451862752 : f32
    %95 = vector.broadcast %cst_57 : f32 to vector<16x16xf32>
    %96 = arith.mulf %95, %94 : vector<16x16xf32>
    %97 = vector.extract_strided_slice %93 {offsets = [0, 0], sizes = [16, 16], strides = [1, 1]} : vector<18x16xf32> to vector<16x16xf32>
    %98 = vector.extract_strided_slice %93 {offsets = [2, 0], sizes = [16, 16], strides = [1, 1]} : vector<18x16xf32> to vector<16x16xf32>
    %99 = arith.addf %97, %98 : vector<16x16xf32>
    %cst_58 = arith.constant 0.274068624 : f32
    %100 = vector.broadcast %cst_58 : f32 to vector<16x16xf32>
    %101 = arith.mulf %100, %99 : vector<16x16xf32>
    %102 = arith.addf %96, %101 : vector<16x16xf32>
    %c0_59 = arith.constant 0 : index
    %c3_60 = arith.constant 3 : index
    %c0_61 = arith.constant 0 : index
    %c0_62 = arith.constant 0 : index
    %103 = vector.load %arg2[%c0_59, %c3_60, %c0_61, %c0_62] : memref<1x4x16x16xf32, #tpu.memory_space<vmem>>, vector<1x1x16x16xf32>
    %104 = vector.shape_cast %103 : vector<1x1x16x16xf32> to vector<16x16xf32>
    %105 = vector.shape_cast %102 : vector<16x16xf32> to vector<1x1x16x16xf32>
    tpu.vector_store %arg2[%c0_59, %c3_60, %c0_61, %c0_62], %105 {strides = array<i32>} : memref<1x4x16x16xf32, #tpu.memory_space<vmem>>, vector<1x1x16x16xf32>,
    %106 = arith.addf %80, %102 : vector<16x16xf32>
    %c1_63 = arith.constant 1 : index
    %c1_64 = arith.constant 1 : index
    %107 = vector.load %arg6[%c1_63, %c1_64] : memref<18x18xf32, #tpu.memory_space<vmem>>, vector<16x16xf32>
    tpu.vector_store %arg6[%c1_63, %c1_64], %106 {strides = array<i32>} : memref<18x18xf32, #tpu.memory_space<vmem>>, vector<16x16xf32>,
    %c0_65 = arith.constant 0 : index
    %c0_66 = arith.constant 0 : index
    %108 = vector.load %arg6[%c0_65, %c0_66] : memref<18x18xf32, #tpu.memory_space<vmem>>, vector<18x18xf32>
    %109 = vector.extract_strided_slice %108 {offsets = [0, 0], sizes = [18, 16], strides = [1, 1]} : vector<18x18xf32> to vector<18x16xf32>
    %110 = vector.extract_strided_slice %108 {offsets = [0, 1], sizes = [18, 16], strides = [1, 1]} : vector<18x18xf32> to vector<18x16xf32>
    %111 = vector.extract_strided_slice %108 {offsets = [0, 2], sizes = [18, 16], strides = [1, 1]} : vector<18x18xf32> to vector<18x16xf32>
    %112 = arith.subf %111, %109 : vector<18x16xf32>
    %113 = arith.addf %109, %111 : vector<18x16xf32>
    %cst_67 = arith.constant 5.000000e-01 : f32
    %114 = vector.broadcast %cst_67 : f32 to vector<18x16xf32>
    %115 = arith.mulf %114, %113 : vector<18x16xf32>
    %116 = arith.addf %110, %115 : vector<18x16xf32>
    %117 = vector.extract_strided_slice %112 {offsets = [1, 0], sizes = [16, 16], strides = [1, 1]} : vector<18x16xf32> to vector<16x16xf32>
    %118 = vector.extract_strided_slice %112 {offsets = [0, 0], sizes = [16, 16], strides = [1, 1]} : vector<18x16xf32> to vector<16x16xf32>
    %119 = vector.extract_strided_slice %112 {offsets = [2, 0], sizes = [16, 16], strides = [1, 1]} : vector<18x16xf32> to vector<16x16xf32>
    %120 = arith.addf %118, %119 : vector<16x16xf32>
    %cst_68 = arith.constant 5.000000e-01 : f32
    %121 = vector.broadcast %cst_68 : f32 to vector<16x16xf32>
    %122 = arith.mulf %121, %120 : vector<16x16xf32>
    %123 = arith.addf %117, %122 : vector<16x16xf32>
    %124 = vector.extract_strided_slice %116 {offsets = [2, 0], sizes = [16, 16], strides = [1, 1]} : vector<18x16xf32> to vector<16x16xf32>
    %125 = vector.extract_strided_slice %116 {offsets = [0, 0], sizes = [16, 16], strides = [1, 1]} : vector<18x16xf32> to vector<16x16xf32>
    %126 = arith.subf %124, %125 : vector<16x16xf32>
    %c0_69 = arith.constant 0 : index
    %c0_70 = arith.constant 0 : index
    %c0_71 = arith.constant 0 : index
    %c0_72 = arith.constant 0 : index
    %127 = vector.load %arg3[%c0_69, %c0_70, %c0_71, %c0_72] : memref<1x1x16x16xf32, #tpu.memory_space<vmem>>, vector<1x1x16x16xf32>
    %128 = vector.shape_cast %127 : vector<1x1x16x16xf32> to vector<16x16xf32>
    %129 = vector.shape_cast %123 : vector<16x16xf32> to vector<1x1x16x16xf32>
    tpu.vector_store %arg3[%c0_69, %c0_70, %c0_71, %c0_72], %129 {strides = array<i32>} : memref<1x1x16x16xf32, #tpu.memory_space<vmem>>, vector<1x1x16x16xf32>,
    %c0_73 = arith.constant 0 : index
    %c0_74 = arith.constant 0 : index
    %c0_75 = arith.constant 0 : index
    %c0_76 = arith.constant 0 : index
    %130 = vector.load %arg4[%c0_73, %c0_74, %c0_75, %c0_76] : memref<1x1x16x16xf32, #tpu.memory_space<vmem>>, vector<1x1x16x16xf32>
    %131 = vector.shape_cast %130 : vector<1x1x16x16xf32> to vector<16x16xf32>
    %132 = vector.shape_cast %126 : vector<16x16xf32> to vector<1x1x16x16xf32>
    tpu.vector_store %arg4[%c0_73, %c0_74, %c0_75, %c0_76], %132 {strides = array<i32>} : memref<1x1x16x16xf32, #tpu.memory_space<vmem>>, vector<1x1x16x16xf32>,
    %133 = arith.mulf %123, %123 : vector<16x16xf32>
    %134 = arith.mulf %126, %126 : vector<16x16xf32>
    %135 = arith.addf %133, %134 : vector<16x16xf32>
    %c0_77 = arith.constant 0 : index
    %c0_78 = arith.constant 0 : index
    %c0_79 = arith.constant 0 : index
    %c0_80 = arith.constant 0 : index
    %136 = vector.load %arg5[%c0_77, %c0_78, %c0_79, %c0_80] : memref<1x1x16x16xf32, #tpu.memory_space<vmem>>, vector<1x1x16x16xf32>
    %137 = vector.shape_cast %136 : vector<1x1x16x16xf32> to vector<16x16xf32>
    %138 = vector.shape_cast %135 : vector<16x16xf32> to vector<1x1x16x16xf32>
    tpu.vector_store %arg5[%c0_77, %c0_78, %c0_79, %c0_80], %138 {strides = array<i32>} : memref<1x1x16x16xf32, #tpu.memory_space<vmem>>, vector<1x1x16x16xf32>,
    return
  }
  func.func @transform_0(%arg0: i32) -> (i32, i32, i32, i32) {
    %c0_i32 = arith.constant 0 : i32
    %c0_i32_0 = arith.constant 0 : i32
    %c0_i32_1 = arith.constant 0 : i32
    %c0_i32_2 = arith.constant 0 : i32
    return %arg0, %c0_i32, %c0_i32_0, %c0_i32_1 : i32, i32, i32, i32
  }
  func.func @transform_1(%arg0: i32) -> (i32, i32, i32, i32) {
    %c0_i32 = arith.constant 0 : i32
    %c0_i32_0 = arith.constant 0 : i32
    %c0_i32_1 = arith.constant 0 : i32
    %c0_i32_2 = arith.constant 0 : i32
    return %arg0, %c0_i32, %c0_i32_0, %c0_i32_1 : i32, i32, i32, i32
  }
  func.func @transform_2(%arg0: i32) -> (i32, i32, i32, i32) {
    %c0_i32 = arith.constant 0 : i32
    %c0_i32_0 = arith.constant 0 : i32
    %c0_i32_1 = arith.constant 0 : i32
    %c0_i32_2 = arith.constant 0 : i32
    return %arg0, %c0_i32, %c0_i32_0, %c0_i32_1 : i32, i32, i32, i32
  }
  func.func @transform_3(%arg0: i32) -> (i32, i32, i32, i32) {
    %c0_i32 = arith.constant 0 : i32
    %c0_i32_0 = arith.constant 0 : i32
    %c0_i32_1 = arith.constant 0 : i32
    %c0_i32_2 = arith.constant 0 : i32
    return %arg0, %c0_i32, %c0_i32_0, %c0_i32_1 : i32, i32, i32, i32
  }
  func.func @transform_4(%arg0: i32) -> (i32, i32, i32, i32) {
    %c0_i32 = arith.constant 0 : i32
    %c0_i32_0 = arith.constant 0 : i32
    %c0_i32_1 = arith.constant 0 : i32
    %c0_i32_2 = arith.constant 0 : i32
    return %arg0, %c0_i32, %c0_i32_0, %c0_i32_1 : i32, i32, i32, i32
  }
}

</mosaic_0001>

<llo_original>
// kernel: tpu_custom_call.1
$region0: #{tpu_custom_call.1}
  #allocation0 [shape = 'u32[]', space=smem, size = 0x4, offset = 0x4, fixed_abs, tag = 'smem constant byte address 0x4 - core index']
  #allocation1 [shape = 'u32[144,128]{1,0:T(1,128)}', space=vmem, size = 0x12000, scoped, tag = 'internal scratch']
  #allocation2 [shape = 'f32[18,18]{1,0:T(8,128)}', space=vmem, size = 0x3000, scoped, tag = 'scratch operand']
  %s0 = inlined_call_operand.hbm [shape: f32[2,4,16,16], index: 0, kind: input, shape index: {}]
  %s1 = inlined_call_operand.hbm [shape: f32[2,4,16,16], index: 1, kind: output, shape index: {0}]
  %s2 = inlined_call_operand.hbm [shape: f32[2,1,16,16], index: 2, kind: output, shape index: {1}]
  %s3 = inlined_call_operand.hbm [shape: f32[2,1,16,16], index: 3, kind: output, shape index: {2}]
  %s4 = inlined_call_operand.hbm [shape: f32[2,1,16,16], index: 4, kind: output, shape index: {3}]
  %5 = xla_tuple %s1, %s2, %s3, %s4
  %s6 = sld [smem:[#allocation0]]
  $region65: #{tpu_custom_call.1} parent=0
    _
  %s8 = ssub.s32 1, %s6
  %s9 = scalar_select 0, %s8, %s6
  $region1: #{tpu_custom_call.1} parent=0
    #allocation3 [shape = 'u8[65536]{0}', space=vmem, size = 0x10000, scoped, tag = 'input window, operand 0']
    #allocation4 [shape = 's32[2]{0}', space=sflag, size = 0x8, scoped, tag = 'scoped memory for tpu_custom_call.1']
    #allocation5 [shape = 's32[2]{0}', space=sflag, size = 0x8, scoped, tag = 'scoped memory for tpu_custom_call.1']
    #allocation6 [shape = 'u8[65536]{0}', space=vmem, size = 0x10000, scoped, tag = 'output window, operand 0']
    #allocation7 [shape = 'u8[16384]{0}', space=vmem, size = 0x4000, scoped, tag = 'output window, operand 1']
    #allocation8 [shape = 's32[2]{0}', space=sflag, size = 0x8, scoped, tag = 'scoped memory for tpu_custom_call.1']
    #allocation9 [shape = 'u8[16384]{0}', space=vmem, size = 0x4000, scoped, tag = 'output window, operand 2']
    #allocation10 [shape = 'u8[16384]{0}', space=vmem, size = 0x4000, scoped, tag = 'output window, operand 3']
    #allocation11 [shape = 's32[2]{0}', space=sflag, size = 0x8, scoped, tag = 'scoped memory for tpu_custom_call.1']
    %10 = vsyncpa [#allocation4], 0
    %s11 = scalar_lea.sflag [#allocation4], 1
    %12 = vsyncpa %s11, 0
    %13 = vsyncpa [#allocation5], 0
    %s14 = scalar_lea.sflag [#allocation5], 1
    %15 = vsyncpa %s14, 0
    %16 = vsyncpa [#allocation8], 0
    %s17 = scalar_lea.sflag [#allocation8], 1
    %18 = vsyncpa %s17, 0
    %19 = vsyncpa [#allocation11], 0
    %s20 = scalar_lea.sflag [#allocation11], 1
    %21 = vsyncpa %s20, 0
    loop: start=0, step=1, limit=4
    $region2: #{tpu_custom_call.1} parent=1 // loop_pre_header
      _
    $region3: #{tpu_custom_call.1} parent=1 // loop_header
      %s23 = sphi 0, %s27
      %p24 = scmp.ge.s32.totalorder %s23, 4
      %s33 = sphi 0, %s35
      %s36 = sphi 0, %s33
      %s37 = sphi 0, %s36
      %s53 = sphi 0, %s37
      %s59 = sphi 0, %s61
      %s62 = sphi 0, %s59
      %s63 = sphi 0, %s62
      %s79 = sphi 0, %s63
      %s85 = sphi 0, %s87
      %s88 = sphi 0, %s85
      %s89 = sphi 0, %s88
      %s105 = sphi 0, %s89
      %s111 = sphi 0, %s113
      %s114 = sphi 0, %s111
      %s115 = sphi 0, %s114
      %s131 = sphi 0, %s115
      %s137 = sphi 0, %s139
      %s140 = sphi 0, %s137
      %s141 = sphi 0, %s140
      %s157 = sphi 0, %s141
    $region4: #{tpu_custom_call.1} parent=1 // loop_header_branch
      %26 = sbr.rel (%p24) target = $region8
    $region5: #{tpu_custom_call.1} parent=1 // loop_body
      %s28 = ssub.s32 %s23, 1
      %s29 = ssub.s32 %s23, 2
      %s30 = sadd.s32 %s23, 1
      %s31 = ssub.s32 %s23, %s30
      %p32 = scmp.eq.s32.totalorder %s31, 0
      %s34 = sadd.s32 %s33, 1
      %s35 = scalar_select %p32, %s33, %s34
      %p38 = pneg %p32
      %p39 = scmp.eq.s32.totalorder %s23, 1
      %p40 = por %p38, %p39
      %p41 = scmp.ne.s32.totalorder %s33, %s36
      %p42 = scmp.eq.s32.totalorder %s23, 0
      %p43 = por %p41, %p42
      %p44 = scmp.ne.s32.totalorder %s33, %s36
      %p45 = scmp.eq.s32.totalorder %s28, 1
      %p46 = por %p44, %p45
      %p47 = scmp.ne.s32.totalorder %s36, %s37
      %p48 = scmp.eq.s32.totalorder %s28, 0
      %p49 = por %p47, %p48
      %p50 = scmp.ne.s32.totalorder %s36, %s37
      %p51 = scmp.eq.s32.totalorder %s29, 1
      %p52 = por %p50, %p51
      %p54 = scmp.ne.s32.totalorder %s37, %s53
      %p55 = scmp.eq.s32.totalorder %s29, 0
      %p56 = por %p54, %p55
      %s57 = ssub.s32 %s23, %s30
      %p58 = scmp.eq.s32.totalorder %s57, 0
      %s60 = sadd.s32 %s59, 1
      %s61 = scalar_select %p58, %s59, %s60
      %p64 = pneg %p58
      %p65 = scmp.eq.s32.totalorder %s23, 1
      %p66 = por %p64, %p65
      %p67 = scmp.ne.s32.totalorder %s59, %s62
      %p68 = scmp.eq.s32.totalorder %s23, 0
      %p69 = por %p67, %p68
      %p70 = scmp.ne.s32.totalorder %s59, %s62
      %p71 = scmp.eq.s32.totalorder %s28, 1
      %p72 = por %p70, %p71
      %p73 = scmp.ne.s32.totalorder %s62, %s63
      %p74 = scmp.eq.s32.totalorder %s28, 0
      %p75 = por %p73, %p74
      %p76 = scmp.ne.s32.totalorder %s62, %s63
      %p77 = scmp.eq.s32.totalorder %s29, 1
      %p78 = por %p76, %p77
      %p80 = scmp.ne.s32.totalorder %s63, %s79
      %p81 = scmp.eq.s32.totalorder %s29, 0
      %p82 = por %p80, %p81
      %s83 = ssub.s32 %s23, %s30
      %p84 = scmp.eq.s32.totalorder %s83, 0
      %s86 = sadd.s32 %s85, 1
      %s87 = scalar_select %p84, %s85, %s86
      %p90 = pneg %p84
      %p91 = scmp.eq.s32.totalorder %s23, 1
      %p92 = por %p90, %p91
      %p93 = scmp.ne.s32.totalorder %s85, %s88
      %p94 = scmp.eq.s32.totalorder %s23, 0
      %p95 = por %p93, %p94
      %p96 = scmp.ne.s32.totalorder %s85, %s88
      %p97 = scmp.eq.s32.totalorder %s28, 1
      %p98 = por %p96, %p97
      %p99 = scmp.ne.s32.totalorder %s88, %s89
      %p100 = scmp.eq.s32.totalorder %s28, 0
      %p101 = por %p99, %p100
      %p102 = scmp.ne.s32.totalorder %s88, %s89
      %p103 = scmp.eq.s32.totalorder %s29, 1
      %p104 = por %p102, %p103
      %p106 = scmp.ne.s32.totalorder %s89, %s105
      %p107 = scmp.eq.s32.totalorder %s29, 0
      %p108 = por %p106, %p107
      %s109 = ssub.s32 %s23, %s30
      %p110 = scmp.eq.s32.totalorder %s109, 0
      %s112 = sadd.s32 %s111, 1
      %s113 = scalar_select %p110, %s111, %s112
      %p116 = pneg %p110
      %p117 = scmp.eq.s32.totalorder %s23, 1
      %p118 = por %p116, %p117
      %p119 = scmp.ne.s32.totalorder %s111, %s114
      %p120 = scmp.eq.s32.totalorder %s23, 0
      %p121 = por %p119, %p120
      %p122 = scmp.ne.s32.totalorder %s111, %s114
      %p123 = scmp.eq.s32.totalorder %s28, 1
      %p124 = por %p122, %p123
      %p125 = scmp.ne.s32.totalorder %s114, %s115
      %p126 = scmp.eq.s32.totalorder %s28, 0
      %p127 = por %p125, %p126
      %p128 = scmp.ne.s32.totalorder %s114, %s115
      %p129 = scmp.eq.s32.totalorder %s29, 1
      %p130 = por %p128, %p129
      %p132 = scmp.ne.s32.totalorder %s115, %s131
      %p133 = scmp.eq.s32.totalorder %s29, 0
      %p134 = por %p132, %p133
      %s135 = ssub.s32 %s23, %s30
      %p136 = scmp.eq.s32.totalorder %s135, 0
      %s138 = sadd.s32 %s137, 1
      %s139 = scalar_select %p136, %s137, %s138
      %p142 = pneg %p136
      %p143 = scmp.eq.s32.totalorder %s23, 1
      %p144 = por %p142, %p143
      %p145 = scmp.ne.s32.totalorder %s137, %s140
      %p146 = scmp.eq.s32.totalorder %s23, 0
      %p147 = por %p145, %p146
      %p148 = scmp.ne.s32.totalorder %s137, %s140
      %p149 = scmp.eq.s32.totalorder %s28, 1
      %p150 = por %p148, %p149
      %p151 = scmp.ne.s32.totalorder %s140, %s141
      %p152 = scmp.eq.s32.totalorder %s28, 0
      %p153 = por %p151, %p152
      %p154 = scmp.ne.s32.totalorder %s140, %s141
      %p155 = scmp.eq.s32.totalorder %s29, 1
      %p156 = por %p154, %p155
      %p158 = scmp.ne.s32.totalorder %s141, %s157
      %p159 = scmp.eq.s32.totalorder %s29, 0
      %p160 = por %p158, %p159
      %p161 = scmp.le.s32.totalorder 1, %s23
      %p162 = scmp.lt.s32.totalorder %s23, 3
      %p163 = pnand %p161, %p162
      %p164 = pneg %p163
      // Predicated region
      $region9: #{tpu_custom_call.1} parent=5 // pred_check
        _
      $region10: #{tpu_custom_call.1} parent=5 // pred_check_branch
        %166 = sbr.rel (%p163) target = $region12
      $region11: #{tpu_custom_call.1} parent=5 // pred_region
        %s167 = ssub.s32 %s23, 1
      $region12: #{tpu_custom_call.1} parent=5 // pred_fallthru
        _
      %p168 = scmp.lt.s32.totalorder %s23, 2
      // Predicated region
      $region13: #{tpu_custom_call.1} parent=5 // pred_check
        %p169 = pneg %p168
      $region14: #{tpu_custom_call.1} parent=5 // pred_check_branch
        %171 = sbr.rel (%p169) target = $region16
      $region15: #{tpu_custom_call.1} parent=5 // pred_region
        // Predicated region
        $region17: #{tpu_custom_call.1} parent=15 // pred_check
          %p172 = pneg %p43
        $region18: #{tpu_custom_call.1} parent=15 // pred_check_branch
          %174 = sbr.rel (%p172) target = $region20
        $region19: #{tpu_custom_call.1} parent=15 // pred_region
          %s175 = sand.u32 %s33, 1
          %s176 = scalar_lea.sflag [#allocation4], %s175
          %s177 = sand.u32 %s33, 1
          %s178 = smul.addr %s177, 64
          %s179 = scalar_lea.vmem [#allocation3], %s178
          %s181 = ssub.s32 1024, 1024
          %182 = vsyncadd %s176, %s181
          %s183 = smul.addr %s23, 8
          %s184 = smul.addr %s183, 128
          %s185 = scalar_lea.hbm %s0, %s184
          %s186 = sshll.u32 %s179, 4
          %s187 = int_to_ptr.vmem [resolvable:$true] %s186
          %192 = dma.hbm_to_vmem [thread:$0]  %s185, 1024, %s187, %s176, 128, 128, 8
        $region20: #{tpu_custom_call.1} parent=15 // pred_fallthru
          _
      $region16: #{tpu_custom_call.1} parent=5 // pred_fallthru
        _
      %p193 = scmp.le.s32.totalorder 1, %s23
      %p194 = scmp.lt.s32.totalorder %s23, 3
      %p195 = pnand %p193, %p194
      %p196 = pneg %p195
      // Predicated region
      $region21: #{tpu_custom_call.1} parent=5 // pred_check
        _
      $region22: #{tpu_custom_call.1} parent=5 // pred_check_branch
        %198 = sbr.rel (%p195) target = $region24
      $region23: #{tpu_custom_call.1} parent=5 // pred_region
        %s199 = ssub.s32 %s23, 1
        %s200 = sand.u32 %s36, 1
        %s201 = scalar_lea.sflag [#allocation4], %s200
        %s202 = sand.u32 %s36, 1
        %s203 = smul.addr %s202, 64
        %s204 = scalar_lea.vmem [#allocation3], %s203
        // Predicated region
        $region25: #{tpu_custom_call.1} parent=23 // pred_check
          %p205 = pneg %p49
        $region26: #{tpu_custom_call.1} parent=23 // pred_check_branch
          %207 = sbr.rel (%p205) target = $region28
        $region27: #{tpu_custom_call.1} parent=23 // pred_region
          %208 = dma.done %s201, 1024
        $region28: #{tpu_custom_call.1} parent=23 // pred_fallthru
          _
        %s209 = sand.u32 %s36, 1
        %s210 = scalar_lea.sflag [#allocation4], %s209
        %s211 = sand.u32 %s36, 1
        %s212 = smul.addr %s211, 64
        %s213 = scalar_lea.vmem [#allocation3], %s212
        %p214 = pneg %p49
        %p215 = pneg %p46
        %p216 = pneg %p75
        %p217 = pneg %p72
        %s218 = sand.u32 %s62, 1
        %s219 = scalar_lea.sflag [#allocation5], %s218
        %s220 = sand.u32 %s62, 1
        %s221 = smul.addr %s220, 64
        %s222 = scalar_lea.vmem [#allocation6], %s221
        %p223 = pneg %p101
        %p224 = pneg %p98
        %s225 = sand.u32 %s28, 1
        %s226 = scalar_lea.sflag [#allocation8], %s225
        %s227 = sand.u32 %s88, 1
        %s228 = smul.addr %s227, 16
        %s229 = scalar_lea.vmem [#allocation7], %s228
        %p230 = pneg %p127
        %p231 = pneg %p124
        %s232 = sand.u32 %s28, 1
        %s233 = scalar_lea.sflag [#allocation8], %s232
        %s234 = sand.u32 %s114, 1
        %s235 = smul.addr %s234, 16
        %s236 = scalar_lea.vmem [#allocation9], %s235
        %p237 = pneg %p153
        %p238 = pneg %p150
        %s239 = sand.u32 %s140, 1
        %s240 = scalar_lea.sflag [#allocation11], %s239
        %s241 = sand.u32 %s140, 1
        %s242 = smul.addr %s241, 16
        %s243 = scalar_lea.vmem [#allocation10], %s242
        %vm244 = vcmask 146432
        %245 = vst.msk [vmem:[#allocation2] sm:$0xff] %vm244, 0.0
        %246 = vst.msk [vmem:[#allocation2 + $0x8] sm:$0xff] %vm244, 0.0
        %vm247 = vcmask 140288
        %248 = vst.msk [vmem:[#allocation2 + $0x10] sm:$0x3] %vm247, 0.0
        %v249 = vld [vmem:[%s204] sm:$0xff]
        %v250 = vld [vmem:[%s204 + $0x8] sm:$0xff]
        %253 = vrot.lane.b32.xlu0 %v249, 1
        %v254 = vpop.permute.xlu0 %253
        %255 = vrot.lane.b32.xlu0 %v250, 1
        %v256 = vpop.permute.xlu0 %255
        %vm259 = vcmask 138248
        %260 = vst.msk [vmem:[#allocation2 + $0x1] sm:$0xff] %vm259, %v254
        %261 = vst.msk [vmem:[#allocation2 + $0x9] sm:$0xff] %vm259, %v256
        %v262 = vld [vmem:[#allocation2] sm:$0xff]
        %v263 = vld [vmem:[#allocation2 + $0x8] sm:$0xff]
        %v264 = vld [vmem:[#allocation2 + $0x10] sm:$0x3]
        %v265 = vmul.f32 %v262, 0.45186275
        %v266 = vmul.f32 %v263, 0.45186275
        %v267 = vmul.f32 %v264, 0.45186275
        %271 = vrot.lane.b32.xlu0 %v262, 126
        %v272 = vpop.permute.xlu0 %271
        %273 = vrot.lane.b32.xlu0 %v263, 126
        %v274 = vpop.permute.xlu0 %273
        %275 = vrot.lane.b32.xlu0 %v264, 126
        %v276 = vpop.permute.xlu0 %275
        %v280 = vadd.f32 %v262, %v272
        %v281 = vadd.f32 %v263, %v274
        %v282 = vadd.f32 %v264, %v276
        %v283 = vmul.f32 %v280, 0.27406862
        %v284 = vmul.f32 %v281, 0.27406862
        %v285 = vmul.f32 %v282, 0.27406862
        %289 = vrot.lane.b32.xlu0 %v283, 1
        %v290 = vpop.permute.xlu0 %289
        %291 = vrot.lane.b32.xlu0 %v284, 1
        %v292 = vpop.permute.xlu0 %291
        %293 = vrot.lane.b32.xlu0 %v285, 1
        %v294 = vpop.permute.xlu0 %293
        %v298 = vadd.f32 %v265, %v290
        %v299 = vadd.f32 %v266, %v292
        %v300 = vadd.f32 %v267, %v294
        %v301 = vmul.f32 %v298, 0.45186275
        %v302 = vmul.f32 %v299, 0.45186275
        %v303 = vmul.f32 %v300, 0.45186275
        %vm307 = vcmask 1045504
        %v308 = vrot.slane %v298, 2
        %v309 = vrot.slane %v299, 2
        %v310 = vsel %vm307, %v308, %v309
        %v311 = vrot.slane %v300, 2
        %v312 = vsel %vm307, %v309, %v311
        %v315 = vadd.f32 %v298, %v310
        %v316 = vadd.f32 %v299, %v312
        %v317 = vmul.f32 %v315, 0.27406862
        %v318 = vmul.f32 %v316, 0.27406862
        %vm321 = vcmask 1040384
        %v322 = vrot.slane %v317, 7
        %v323 = vrot.slane %v318, 7
        %v324 = vsel %vm321, %v322, %v323
        %v328 = vadd.f32 %v301, %v322
        %v329 = vadd.f32 %v302, %v324
        %v330 = vadd.f32 %v303, %v323
        %334 = vrot.lane.b32.xlu0 %v328, 127
        %v335 = vpop.permute.xlu0 %334
        %336 = vrot.lane.b32.xlu0 %v329, 127
        %v337 = vpop.permute.xlu0 %336
        %338 = vrot.lane.b32.xlu0 %v330, 127
        %v339 = vpop.permute.xlu0 %338
        %vm343 = vcmask 130049
        %344 = vst.msk [vmem:[%s222 - $0x1] sm:$0xfe] %vm343, %v335
        %vm345 = vcmask 130048
        %346 = vst.msk [vmem:[%s222 + $0x7] sm:$0xff] %vm345, %v337
        %vm347 = vcmask 122880
        %348 = vst.msk [vmem:[%s222 + $0xf] sm:$0x1] %vm347, %v339
        %v349 = vadd.f32 %v328, 0.0
        %v350 = vadd.f32 %v329, 0.0
        %v351 = vadd.f32 %v330, 0.0
        %s352 = scalar_lea.vmem %s204, 16 [#allocation3]
        %v353 = vld [vmem:[%s352] sm:$0xff]
        %v354 = vld [vmem:[%s352 + $0x8] sm:$0xff]
        %357 = vrot.lane.b32.xlu0 %v353, 1
        %v358 = vpop.permute.xlu0 %357
        %359 = vrot.lane.b32.xlu0 %v354, 1
        %v360 = vpop.permute.xlu0 %359
        %363 = vst.msk [vmem:[#allocation2 + $0x1] sm:$0xff] %vm259, %v358
        %364 = vst.msk [vmem:[#allocation2 + $0x9] sm:$0xff] %vm259, %v360
        %v365 = vld [vmem:[#allocation2] sm:$0xff]
        %v366 = vld [vmem:[#allocation2 + $0x8] sm:$0xff]
        %v367 = vld [vmem:[#allocation2 + $0x10] sm:$0x3]
        %v368 = vmul.f32 %v365, 0.45186275
        %v369 = vmul.f32 %v366, 0.45186275
        %v370 = vmul.f32 %v367, 0.45186275
        %374 = vrot.lane.b32.xlu0 %v365, 126
        %v375 = vpop.permute.xlu0 %374
        %376 = vrot.lane.b32.xlu0 %v366, 126
        %v377 = vpop.permute.xlu0 %376
        %378 = vrot.lane.b32.xlu0 %v367, 126
        %v379 = vpop.permute.xlu0 %378
        %v383 = vadd.f32 %v365, %v375
        %v384 = vadd.f32 %v366, %v377
        %v385 = vadd.f32 %v367, %v379
        %v386 = vmul.f32 %v383, 0.27406862
        %v387 = vmul.f32 %v384, 0.27406862
        %v388 = vmul.f32 %v385, 0.27406862
        %392 = vrot.lane.b32.xlu0 %v386, 1
        %v393 = vpop.permute.xlu0 %392
        %394 = vrot.lane.b32.xlu0 %v387, 1
        %v395 = vpop.permute.xlu0 %394
        %396 = vrot.lane.b32.xlu0 %v388, 1
        %v397 = vpop.permute.xlu0 %396
        %v401 = vadd.f32 %v368, %v393
        %v402 = vadd.f32 %v369, %v395
        %v403 = vadd.f32 %v370, %v397
        %v404 = vmul.f32 %v401, 0.45186275
        %v405 = vmul.f32 %v402, 0.45186275
        %v406 = vmul.f32 %v403, 0.45186275
        %v410 = vrot.slane %v401, 2
        %v411 = vrot.slane %v402, 2
        %v412 = vsel %vm307, %v410, %v411
        %v413 = vrot.slane %v403, 2
        %v414 = vsel %vm307, %v411, %v413
        %v417 = vadd.f32 %v401, %v412
        %v418 = vadd.f32 %v402, %v414
        %v419 = vmul.f32 %v417, 0.27406862
        %v420 = vmul.f32 %v418, 0.27406862
        %v423 = vrot.slane %v419, 7
        %v424 = vrot.slane %v420, 7
        %v425 = vsel %vm321, %v423, %v424
        %v429 = vadd.f32 %v404, %v423
        %v430 = vadd.f32 %v405, %v425
        %v431 = vadd.f32 %v406, %v424
        %435 = vrot.lane.b32.xlu0 %v429, 127
        %v436 = vpop.permute.xlu0 %435
        %437 = vrot.lane.b32.xlu0 %v430, 127
        %v438 = vpop.permute.xlu0 %437
        %439 = vrot.lane.b32.xlu0 %v431, 127
        %v440 = vpop.permute.xlu0 %439
        %s444 = scalar_lea.vmem %s222, 16 [#allocation6]
        %445 = vst.msk [vmem:[%s444 - $0x1] sm:$0xfe] %vm343, %v436
        %446 = vst.msk [vmem:[%s444 + $0x7] sm:$0xff] %vm345, %v438
        %447 = vst.msk [vmem:[%s444 + $0xf] sm:$0x1] %vm347, %v440
        %v448 = vadd.f32 %v349, %v429
        %v449 = vadd.f32 %v350, %v430
        %v450 = vadd.f32 %v351, %v431
        %s451 = scalar_lea.vmem %s204, 32 [#allocation3]
        %v452 = vld [vmem:[%s451] sm:$0xff]
        %v453 = vld [vmem:[%s451 + $0x8] sm:$0xff]
        %456 = vrot.lane.b32.xlu0 %v452, 1
        %v457 = vpop.permute.xlu0 %456
        %458 = vrot.lane.b32.xlu0 %v453, 1
        %v459 = vpop.permute.xlu0 %458
        %462 = vst.msk [vmem:[#allocation2 + $0x1] sm:$0xff] %vm259, %v457
        %463 = vst.msk [vmem:[#allocation2 + $0x9] sm:$0xff] %vm259, %v459
        %v464 = vld [vmem:[#allocation2] sm:$0xff]
        %v465 = vld [vmem:[#allocation2 + $0x8] sm:$0xff]
        %v466 = vld [vmem:[#allocation2 + $0x10] sm:$0x3]
        %v467 = vmul.f32 %v464, 0.45186275
        %v468 = vmul.f32 %v465, 0.45186275
        %v469 = vmul.f32 %v466, 0.45186275
        %473 = vrot.lane.b32.xlu0 %v464, 126
        %v474 = vpop.permute.xlu0 %473
        %475 = vrot.lane.b32.xlu0 %v465, 126
        %v476 = vpop.permute.xlu0 %475
        %477 = vrot.lane.b32.xlu0 %v466, 126
        %v478 = vpop.permute.xlu0 %477
        %v482 = vadd.f32 %v464, %v474
        %v483 = vadd.f32 %v465, %v476
        %v484 = vadd.f32 %v466, %v478
        %v485 = vmul.f32 %v482, 0.27406862
        %v486 = vmul.f32 %v483, 0.27406862
        %v487 = vmul.f32 %v484, 0.27406862
        %491 = vrot.lane.b32.xlu0 %v485, 1
        %v492 = vpop.permute.xlu0 %491
        %493 = vrot.lane.b32.xlu0 %v486, 1
        %v494 = vpop.permute.xlu0 %493
        %495 = vrot.lane.b32.xlu0 %v487, 1
        %v496 = vpop.permute.xlu0 %495
        %v500 = vadd.f32 %v467, %v492
        %v501 = vadd.f32 %v468, %v494
        %v502 = vadd.f32 %v469, %v496
        %v503 = vmul.f32 %v500, 0.45186275
        %v504 = vmul.f32 %v501, 0.45186275
        %v505 = vmul.f32 %v502, 0.45186275
        %v509 = vrot.slane %v500, 2
        %v510 = vrot.slane %v501, 2
        %v511 = vsel %vm307, %v509, %v510
        %v512 = vrot.slane %v502, 2
        %v513 = vsel %vm307, %v510, %v512
        %v516 = vadd.f32 %v500, %v511
        %v517 = vadd.f32 %v501, %v513
        %v518 = vmul.f32 %v516, 0.27406862
        %v519 = vmul.f32 %v517, 0.27406862
        %v522 = vrot.slane %v518, 7
        %v523 = vrot.slane %v519, 7
        %v524 = vsel %vm321, %v522, %v523
        %v528 = vadd.f32 %v503, %v522
        %v529 = vadd.f32 %v504, %v524
        %v530 = vadd.f32 %v505, %v523
        %534 = vrot.lane.b32.xlu0 %v528, 127
        %v535 = vpop.permute.xlu0 %534
        %536 = vrot.lane.b32.xlu0 %v529, 127
        %v537 = vpop.permute.xlu0 %536
        %538 = vrot.lane.b32.xlu0 %v530, 127
        %v539 = vpop.permute.xlu0 %538
        %s543 = scalar_lea.vmem %s222, 32 [#allocation6]
        %544 = vst.msk [vmem:[%s543 - $0x1] sm:$0xfe] %vm343, %v535
        %545 = vst.msk [vmem:[%s543 + $0x7] sm:$0xff] %vm345, %v537
        %546 = vst.msk [vmem:[%s543 + $0xf] sm:$0x1] %vm347, %v539
        %v547 = vadd.f32 %v448, %v528
        %v548 = vadd.f32 %v449, %v529
        %v549 = vadd.f32 %v450, %v530
        %s550 = scalar_lea.vmem %s204, 48 [#allocation3]
        %v551 = vld [vmem:[%s550] sm:$0xff]
        %v552 = vld [vmem:[%s550 + $0x8] sm:$0xff]
        %555 = vrot.lane.b32.xlu0 %v551, 1
        %v556 = vpop.permute.xlu0 %555
        %557 = vrot.lane.b32.xlu0 %v552, 1
        %v558 = vpop.permute.xlu0 %557
        %561 = vst.msk [vmem:[#allocation2 + $0x1] sm:$0xff] %vm259, %v556
        %562 = vst.msk [vmem:[#allocation2 + $0x9] sm:$0xff] %vm259, %v558
        %v563 = vld [vmem:[#allocation2] sm:$0xff]
        %v564 = vld [vmem:[#allocation2 + $0x8] sm:$0xff]
        %v565 = vld [vmem:[#allocation2 + $0x10] sm:$0x3]
        %v566 = vmul.f32 %v563, 0.45186275
        %v567 = vmul.f32 %v564, 0.45186275
        %v568 = vmul.f32 %v565, 0.45186275
        %572 = vrot.lane.b32.xlu0 %v563, 126
        %v573 = vpop.permute.xlu0 %572
        %574 = vrot.lane.b32.xlu0 %v564, 126
        %v575 = vpop.permute.xlu0 %574
        %576 = vrot.lane.b32.xlu0 %v565, 126
        %v577 = vpop.permute.xlu0 %576
        %v581 = vadd.f32 %v563, %v573
        %v582 = vadd.f32 %v564, %v575
        %v583 = vadd.f32 %v565, %v577
        %v584 = vmul.f32 %v581, 0.27406862
        %v585 = vmul.f32 %v582, 0.27406862
        %v586 = vmul.f32 %v583, 0.27406862
        %590 = vrot.lane.b32.xlu0 %v584, 1
        %v591 = vpop.permute.xlu0 %590
        %592 = vrot.lane.b32.xlu0 %v585, 1
        %v593 = vpop.permute.xlu0 %592
        %594 = vrot.lane.b32.xlu0 %v586, 1
        %v595 = vpop.permute.xlu0 %594
        %v599 = vadd.f32 %v566, %v591
        %v600 = vadd.f32 %v567, %v593
        %v601 = vadd.f32 %v568, %v595
        %v602 = vmul.f32 %v599, 0.45186275
        %v603 = vmul.f32 %v600, 0.45186275
        %v604 = vmul.f32 %v601, 0.45186275
        %v608 = vrot.slane %v599, 2
        %v609 = vrot.slane %v600, 2
        %v610 = vsel %vm307, %v608, %v609
        %v611 = vrot.slane %v601, 2
        %v612 = vsel %vm307, %v609, %v611
        %v615 = vadd.f32 %v599, %v610
        %v616 = vadd.f32 %v600, %v612
        %v617 = vmul.f32 %v615, 0.27406862
        %v618 = vmul.f32 %v616, 0.27406862
        %v621 = vrot.slane %v617, 7
        %v622 = vrot.slane %v618, 7
        %v623 = vsel %vm321, %v621, %v622
        %v627 = vadd.f32 %v602, %v621
        %v628 = vadd.f32 %v603, %v623
        %v629 = vadd.f32 %v604, %v622
        %633 = vrot.lane.b32.xlu0 %v627, 127
        %v634 = vpop.permute.xlu0 %633
        %635 = vrot.lane.b32.xlu0 %v628, 127
        %v636 = vpop.permute.xlu0 %635
        %637 = vrot.lane.b32.xlu0 %v629, 127
        %v638 = vpop.permute.xlu0 %637
        %s642 = scalar_lea.vmem %s222, 48 [#allocation6]
        %643 = vst.msk [vmem:[%s642 - $0x1] sm:$0xfe] %vm343, %v634
        %644 = vst.msk [vmem:[%s642 + $0x7] sm:$0xff] %vm345, %v636
        %645 = vst.msk [vmem:[%s642 + $0xf] sm:$0x1] %vm347, %v638
        %v646 = vadd.f32 %v547, %v627
        %v647 = vadd.f32 %v548, %v628
        %v648 = vadd.f32 %v549, %v629
        %vm649 = vcmask 138249
        %650 = vst.msk [vmem:[#allocation2] sm:$0xfe] %vm649, %v646
        %651 = vst.msk [vmem:[#allocation2 + $0x8] sm:$0xff] %vm259, %v647
        %vm652 = vcmask 131080
        %653 = vst.msk [vmem:[#allocation2 + $0x10] sm:$0x1] %vm652, %v648
        %v654 = vld [vmem:[#allocation2] sm:$0xff]
        %v655 = vld [vmem:[#allocation2 + $0x8] sm:$0xff]
        %v656 = vld [vmem:[#allocation2 + $0x10] sm:$0x3]
        %660 = vrot.lane.b32.xlu0 %v654, 2
        %v661 = vpop.permute.xlu0 %660
        %662 = vrot.lane.b32.xlu0 %v655, 2
        %v663 = vpop.permute.xlu0 %662
        %664 = vrot.lane.b32.xlu0 %v656, 2
        %v665 = vpop.permute.xlu0 %664
        %v669 = vsub.f32 %v654, %v661
        %v670 = vsub.f32 %v655, %v663
        %v671 = vsub.f32 %v656, %v665
        %672 = vrot.lane.b32.xlu0 %v654, 126
        %v673 = vpop.permute.xlu0 %672
        %674 = vrot.lane.b32.xlu0 %v655, 126
        %v675 = vpop.permute.xlu0 %674
        %676 = vrot.lane.b32.xlu0 %v656, 126
        %v677 = vpop.permute.xlu0 %676
        %v681 = vadd.f32 %v654, %v673
        %v682 = vadd.f32 %v655, %v675
        %v683 = vadd.f32 %v656, %v677
        %v684 = vmul.f32 %v681, 0.5
        %v685 = vmul.f32 %v682, 0.5
        %v686 = vmul.f32 %v683, 0.5
        %690 = vrot.lane.b32.xlu0 %v684, 1
        %v691 = vpop.permute.xlu0 %690
        %692 = vrot.lane.b32.xlu0 %v685, 1
        %v693 = vpop.permute.xlu0 %692
        %694 = vrot.lane.b32.xlu0 %v686, 1
        %v695 = vpop.permute.xlu0 %694
        %v699 = vadd.f32 %v654, %v691
        %v700 = vadd.f32 %v655, %v693
        %v701 = vadd.f32 %v656, %v695
        %v705 = vrot.slane %v669, 2
        %v706 = vrot.slane %v670, 2
        %v707 = vsel %vm307, %v705, %v706
        %v708 = vrot.slane %v671, 2
        %v709 = vsel %vm307, %v706, %v708
        %v712 = vadd.f32 %v669, %v707
        %v713 = vadd.f32 %v670, %v709
        %v714 = vmul.f32 %v712, 0.5
        %v715 = vmul.f32 %v713, 0.5
        %v718 = vrot.slane %v714, 7
        %v719 = vrot.slane %v715, 7
        %v720 = vsel %vm321, %v718, %v719
        %v724 = vadd.f32 %v669, %v718
        %v725 = vadd.f32 %v670, %v720
        %v726 = vadd.f32 %v671, %v719
        %vm729 = vcmask 1041408
        %v730 = vrot.slane %v699, 6
        %v731 = vrot.slane %v700, 6
        %v732 = vsel %vm729, %v730, %v731
        %v736 = vsub.f32 %v699, %v730
        %v737 = vsub.f32 %v700, %v732
        %v738 = vsub.f32 %v701, %v731
        %742 = vrot.lane.b32.xlu0 %v724, 126
        %v743 = vpop.permute.xlu0 %742
        %744 = vrot.lane.b32.xlu0 %v725, 126
        %v745 = vpop.permute.xlu0 %744
        %746 = vrot.lane.b32.xlu0 %v726, 126
        %v747 = vpop.permute.xlu0 %746
        %751 = vst.msk [vmem:[%s229 - $0x1] sm:$0xfe] %vm343, %v743
        %752 = vst.msk [vmem:[%s229 + $0x7] sm:$0xff] %vm345, %v745
        %753 = vst.msk [vmem:[%s229 + $0xf] sm:$0x1] %vm347, %v747
        %757 = vrot.lane.b32.xlu0 %v736, 127
        %v758 = vpop.permute.xlu0 %757
        %759 = vrot.lane.b32.xlu0 %v737, 127
        %v760 = vpop.permute.xlu0 %759
        %761 = vrot.lane.b32.xlu0 %v738, 127
        %v762 = vpop.permute.xlu0 %761
        %vm766 = vcmask 130050
        %767 = vst.msk [vmem:[%s236 - $0x2] sm:$0xfc] %vm766, %v758
        %768 = vst.msk [vmem:[%s236 + $0x6] sm:$0xff] %vm345, %v760
        %vm769 = vcmask 123904
        %770 = vst.msk [vmem:[%s236 + $0xe] sm:$0x3] %vm769, %v762
        %v771 = vmul.f32 %v724, %v724
        %v772 = vmul.f32 %v725, %v725
        %v773 = vmul.f32 %v726, %v726
        %v774 = vmul.f32 %v736, %v736
        %v775 = vmul.f32 %v737, %v737
        %v776 = vmul.f32 %v738, %v738
        %vm780 = vcmask 1046528
        %v781 = vrot.slane %v774, 1
        %v782 = vrot.slane %v775, 1
        %v783 = vsel %vm780, %v781, %v782
        %v784 = vrot.slane %v776, 1
        %v785 = vsel %vm780, %v782, %v784
        %786 = vrot.lane.b32.xlu0 %v783, 1
        %v787 = vpop.permute.xlu0 %786
        %788 = vrot.lane.b32.xlu0 %v785, 1
        %v789 = vpop.permute.xlu0 %788
        %790 = vrot.lane.b32.xlu0 %v784, 1
        %v791 = vpop.permute.xlu0 %790
        %v795 = vadd.f32 %v771, %v787
        %v796 = vadd.f32 %v772, %v789
        %v797 = vadd.f32 %v773, %v791
        %801 = vrot.lane.b32.xlu0 %v795, 126
        %v802 = vpop.permute.xlu0 %801
        %803 = vrot.lane.b32.xlu0 %v796, 126
        %v804 = vpop.permute.xlu0 %803
        %805 = vrot.lane.b32.xlu0 %v797, 126
        %v806 = vpop.permute.xlu0 %805
        %810 = vst.msk [vmem:[%s243 - $0x1] sm:$0xfe] %vm343, %v802
        %811 = vst.msk [vmem:[%s243 + $0x7] sm:$0xff] %vm345, %v804
        %812 = vst.msk [vmem:[%s243 + $0xf] sm:$0x1] %vm347, %v806
        %s813 = sand.u32 %s62, 1
        %s814 = scalar_lea.sflag [#allocation5], %s813
        %s815 = sand.u32 %s62, 1
        %s816 = smul.addr %s815, 64
        %s817 = scalar_lea.vmem [#allocation6], %s816
        %s818 = sand.u32 %s28, 1
        %s819 = scalar_lea.sflag [#allocation8], %s818
        %s820 = sand.u32 %s88, 1
        %s821 = smul.addr %s820, 16
        %s822 = scalar_lea.vmem [#allocation7], %s821
        %s823 = sand.u32 %s28, 1
        %s824 = scalar_lea.sflag [#allocation8], %s823
        %s825 = sand.u32 %s114, 1
        %s826 = smul.addr %s825, 16
        %s827 = scalar_lea.vmem [#allocation9], %s826
        %s828 = sand.u32 %s140, 1
        %s829 = scalar_lea.sflag [#allocation11], %s828
        %s830 = sand.u32 %s140, 1
        %s831 = smul.addr %s830, 16
        %s832 = scalar_lea.vmem [#allocation10], %s831
        // Predicated region
        $region29: #{tpu_custom_call.1} parent=23 // pred_check
          %p833 = pneg %p72
        $region30: #{tpu_custom_call.1} parent=23 // pred_check_branch
          %835 = sbr.rel (%p833) target = $region32
        $region31: #{tpu_custom_call.1} parent=23 // pred_region
          %s837 = ssub.s32 1024, 1024
          %838 = vsyncadd %s814, %s837
          %s839 = smul.addr %s28, 8
          %s840 = smul.addr %s839, 128
          %s841 = scalar_lea.hbm %s1, %s840
          %s842 = sshll.u32 %s817, 4
          %s843 = int_to_ptr.vmem [resolvable:$true] %s842
          %848 = dma.vmem_to_hbm [thread:$0]  %s843, 1024, %s841, %s814, 128, 128, 8
        $region32: #{tpu_custom_call.1} parent=23 // pred_fallthru
          _
        // Predicated region
        $region33: #{tpu_custom_call.1} parent=23 // pred_check
          %p849 = pneg %p98
        $region34: #{tpu_custom_call.1} parent=23 // pred_check_branch
          %851 = sbr.rel (%p849) target = $region36
        $region35: #{tpu_custom_call.1} parent=23 // pred_region
          %s853 = ssub.s32 256, 256
          %854 = vsyncadd %s819, %s853
          %s855 = smul.addr %s28, 2
          %s856 = smul.addr %s855, 128
          %s857 = scalar_lea.hbm %s2, %s856
          %s858 = sshll.u32 %s822, 4
          %s859 = int_to_ptr.vmem [resolvable:$true] %s858
          %864 = dma.vmem_to_hbm [thread:$0]  %s859, 256, %s857, %s819, 128, 128, 8
        $region36: #{tpu_custom_call.1} parent=23 // pred_fallthru
          _
        // Predicated region
        $region37: #{tpu_custom_call.1} parent=23 // pred_check
          %p865 = pneg %p124
        $region38: #{tpu_custom_call.1} parent=23 // pred_check_branch
          %867 = sbr.rel (%p865) target = $region40
        $region39: #{tpu_custom_call.1} parent=23 // pred_region
          %s869 = ssub.s32 256, 256
          %870 = vsyncadd %s824, %s869
          %s871 = smul.addr %s28, 2
          %s872 = smul.addr %s871, 128
          %s873 = scalar_lea.hbm %s3, %s872
          %s874 = sshll.u32 %s827, 4
          %s875 = int_to_ptr.vmem [resolvable:$true] %s874
          %880 = dma.vmem_to_hbm [thread:$0]  %s875, 256, %s873, %s824, 128, 128, 8
        $region40: #{tpu_custom_call.1} parent=23 // pred_fallthru
          _
        // Predicated region
        $region41: #{tpu_custom_call.1} parent=23 // pred_check
          %p881 = pneg %p150
        $region42: #{tpu_custom_call.1} parent=23 // pred_check_branch
          %883 = sbr.rel (%p881) target = $region44
        $region43: #{tpu_custom_call.1} parent=23 // pred_region
          %s885 = ssub.s32 256, 256
          %886 = vsyncadd %s829, %s885
          %s887 = smul.addr %s28, 2
          %s888 = smul.addr %s887, 128
          %s889 = scalar_lea.hbm %s4, %s888
          %s890 = sshll.u32 %s832, 4
          %s891 = int_to_ptr.vmem [resolvable:$true] %s890
          %896 = dma.vmem_to_hbm [thread:$0]  %s891, 256, %s889, %s829, 128, 128, 8
        $region44: #{tpu_custom_call.1} parent=23 // pred_fallthru
          _
      $region24: #{tpu_custom_call.1} parent=5 // pred_fallthru
        _
      %p897 = scmp.le.s32.totalorder 2, %s23
      // Predicated region
      $region45: #{tpu_custom_call.1} parent=5 // pred_check
        %p898 = pneg %p897
      $region46: #{tpu_custom_call.1} parent=5 // pred_check_branch
        %900 = sbr.rel (%p898) target = $region48
      $region47: #{tpu_custom_call.1} parent=5 // pred_region
        %s901 = ssub.s32 %s23, 2
        // Predicated region
        $region49: #{tpu_custom_call.1} parent=47 // pred_check
          %p902 = pneg %p78
        $region50: #{tpu_custom_call.1} parent=47 // pred_check_branch
          %904 = sbr.rel (%p902) target = $region52
        $region51: #{tpu_custom_call.1} parent=47 // pred_region
          %s905 = sand.u32 %s63, 1
          %s906 = scalar_lea.sflag [#allocation5], %s905
          %s907 = sand.u32 %s63, 1
          %s908 = smul.addr %s907, 64
          %s909 = scalar_lea.vmem [#allocation6], %s908
          %910 = dma.done %s906, 1024
        $region52: #{tpu_custom_call.1} parent=47 // pred_fallthru
          _
        // Predicated region
        $region53: #{tpu_custom_call.1} parent=47 // pred_check
          %p911 = pneg %p104
        $region54: #{tpu_custom_call.1} parent=47 // pred_check_branch
          %913 = sbr.rel (%p911) target = $region56
        $region55: #{tpu_custom_call.1} parent=47 // pred_region
          %s914 = sand.u32 %s29, 1
          %s915 = scalar_lea.sflag [#allocation8], %s914
          %s916 = sand.u32 %s89, 1
          %s917 = smul.addr %s916, 16
          %s918 = scalar_lea.vmem [#allocation7], %s917
          %919 = dma.done %s915, 256
        $region56: #{tpu_custom_call.1} parent=47 // pred_fallthru
          _
        // Predicated region
        $region57: #{tpu_custom_call.1} parent=47 // pred_check
          %p920 = pneg %p130
        $region58: #{tpu_custom_call.1} parent=47 // pred_check_branch
          %922 = sbr.rel (%p920) target = $region60
        $region59: #{tpu_custom_call.1} parent=47 // pred_region
          %s923 = sand.u32 %s29, 1
          %s924 = scalar_lea.sflag [#allocation8], %s923
          %s925 = sand.u32 %s115, 1
          %s926 = smul.addr %s925, 16
          %s927 = scalar_lea.vmem [#allocation9], %s926
          %928 = dma.done %s924, 256
        $region60: #{tpu_custom_call.1} parent=47 // pred_fallthru
          _
        // Predicated region
        $region61: #{tpu_custom_call.1} parent=47 // pred_check
          %p929 = pneg %p156
        $region62: #{tpu_custom_call.1} parent=47 // pred_check_branch
          %931 = sbr.rel (%p929) target = $region64
        $region63: #{tpu_custom_call.1} parent=47 // pred_region
          %s932 = sand.u32 %s141, 1
          %s933 = scalar_lea.sflag [#allocation11], %s932
          %s934 = sand.u32 %s141, 1
          %s935 = smul.addr %s934, 16
          %s936 = scalar_lea.vmem [#allocation10], %s935
          %937 = dma.done %s933, 256
        $region64: #{tpu_custom_call.1} parent=47 // pred_fallthru
          _
      $region48: #{tpu_custom_call.1} parent=5 // pred_fallthru
        _
    $region6: #{tpu_custom_call.1} parent=1 // loop_footer
      %s27 = sadd.s32 1, %s23
    $region7: #{tpu_custom_call.1} parent=1 // loop_footer_branch
      %22 = sbr.rel target = $region3
    $region8: #{tpu_custom_call.1} parent=1 // loop_exit
      _
    %938 = vsyncpa [#allocation4], 1
    %s939 = scalar_lea.sflag [#allocation4], 1
    %940 = vsyncpa %s939, 1
    %941 = vsyncpa [#allocation5], 1
    %s942 = scalar_lea.sflag [#allocation5], 1
    %943 = vsyncpa %s942, 1
    %944 = vsyncpa [#allocation8], 1
    %s945 = scalar_lea.sflag [#allocation8], 1
    %946 = vsyncpa %s945, 1
    %947 = vsyncpa [#allocation11], 1
    %s948 = scalar_lea.sflag [#allocation11], 1
    %949 = vsyncpa %s948, 1

</llo_original>
